<compile_context>
chip_gen: v6e
topology: v6e:2x2x1
jax: 0.10.0
libtpu: 0.0.40
codegen_flags: <defaults>
</compile_context>

<pallas_src>
import functools

import jax
import jax.numpy as jnp
from jax import lax
from jax.experimental import pallas as pl
from jax.experimental.pallas import tpu as pltpu


def _relu_k_mlp_kernel(x_ref, w1_ref, b1_ref, w2_ref, o_ref, *, k, lane_dense_out):
    # x_ref : (TB, D_in)  batch tile in natural layout
    # w1_ref: (D_in, H)   first-layer weight (== torch fc1.weight.T)
    # b1_ref: (H, 1)      first-layer bias
    # w2_ref: (H, C)      second-layer weight (== torch fc2.weight.T), no bias
    # o_ref : (C, TB) if lane_dense_out else (TB, C)
    x = x_ref[...]
    w1 = w1_ref[...]
    b1 = b1_ref[...]
    w2 = w2_ref[...]

    num_classes = w2.shape[1]  # static

    # fc1 + bias: contract D_in of w1 (dim 0) with D_in of x (dim 1) -> (H, TB).
    # Batch stays on lanes; Mosaic handles the tiny in-kernel relayout of the
    # (TB, D_in) tile for the MXU, hidden under the input DMA.
    h = lax.dot_general(
        w1, x,
        dimension_numbers=(((0,), (1,)), ((), ())),
        preferred_element_type=jnp.float32,
    ) + b1

    # ReLU^k (k is a static Python int -> repeated multiplies, no exp/log path).
    h = jnp.maximum(h, 0.0)
    if k != 1:
        h = h ** k

    if num_classes <= 8:
        # Tiny-C path: VPU lane-broadcast multiply + sublane reduce (XLU slot),
        # avoids a narrow-N MXU matmul; result is already lane-dense (C, TB).
        rows = [
            jnp.sum(h * w2[:, c:c + 1], axis=0, keepdims=True)  # (1, TB)
            for c in range(num_classes)
        ]
        out = rows[0] if num_classes == 1 else jnp.concatenate(rows, axis=0)
    else:
        # Larger C: one MXU matmul (C, H) x (H, TB) -> (C, TB).
        out = lax.dot_general(
            w2, h,
            dimension_numbers=(((0,), (0,)), ((), ())),
            preferred_element_type=jnp.float32,
        )

    if lane_dense_out:
        o_ref[...] = out.astype(o_ref.dtype)          # (C, TB), unmasked lane-dense vst
    else:
        o_ref[...] = out.T.astype(o_ref.dtype)        # (TB, C), tiny masked store


def _pick_tile_b(B, cap=32768):
    """Batch-tile selection.

    - Small B: single grid step (per-step pipeline overhead ~0.35 us dominates).
    - Large B: lane-aligned tiles with >= 2 grid steps so v7x megacore can shard
      the "parallel" batch axis; cap at 32768 lanes so the f32 hidden temp
      (H * tile_b * 4 ~= 4 MB at H=32) plus double-buffered x/out tiles stay
      well under v5e's 16 MiB scoped-VMEM default (v6e/v7x have >= 32 MiB).
    """
    if B <= 128:
        return B
    if B % 128 != 0:
        # TODO(synk): pad-and-mask to tile arbitrary large batches.
        return B
    target = min(cap, B // 2)
    t = (target // 128) * 128
    while t >= 128 and B % t != 0:
        t -= 128
    return t if t >= 128 else B


def relu_k_mlp(x, w1, b1, w2, *, k=1, tile_b=None):
    """Forward pass of the shallow ReLU^k network.

    x : (B, D_in) float32
    w1: (D_in, H) float32   (== torch fc1.weight.T)
    b1: (H,)      float32   (== torch fc1.bias)
    w2: (H, C)    float32   (== torch fc2.weight.T)
    returns (B, C) float32
    """
    assert isinstance(k, int), "k must be a static Python int (matches torch integer power)"
    B, d_in = x.shape
    d_in_w, H = w1.shape
    assert d_in == d_in_w
    H_w, C = w2.shape
    assert H == H_w

    if tile_b is None:
        tile_b = _pick_tile_b(B)
    assert B % tile_b == 0, "batch must be divisible by tile_b"
    assert tile_b == B or tile_b % 128 == 0, "tile_b must be lane-aligned (x128) or == B"

    b1_2d = b1.reshape(H, 1)  # pure reshape, no data movement

    grid = (B // tile_b,)
    lane_dense_out = (C == 1)
    kernel = functools.partial(_relu_k_mlp_kernel, k=k, lane_dense_out=lane_dense_out)

    cost = pl.CostEstimate(
        flops=2 * B * (d_in * H + H * C),
        transcendentals=0,
        bytes_accessed=4 * (B * d_in + d_in * H + H + H * C + B * C),
    )

    if lane_dense_out:
        out_shape = jax.ShapeDtypeStruct((C, B), jnp.float32)
        out_spec = pl.BlockSpec((C, tile_b), lambda i: (0, i))   # lane-dense output
    else:
        out_shape = jax.ShapeDtypeStruct((B, C), jnp.float32)
        out_spec = pl.BlockSpec((tile_b, C), lambda i: (i, 0))   # natural output layout

    out = pl.pallas_call(
        kernel,
        out_shape=out_shape,
        grid_spec=pltpu.PrefetchScalarGridSpec(
            num_scalar_prefetch=0,
            grid=grid,
            in_specs=[
                pl.BlockSpec((tile_b, d_in), lambda i: (i, 0)),  # x: natural layout, contiguous DMA
                pl.BlockSpec((d_in, H), lambda i: (0, 0)),       # w1: whole weight
                pl.BlockSpec((H, 1), lambda i: (0, 0)),          # b1
                pl.BlockSpec((H, C), lambda i: (0, 0)),          # w2: whole weight
            ],
            out_specs=out_spec,
        ),
        compiler_params=pltpu.CompilerParams(
            dimension_semantics=("parallel",),
        ),
        cost_estimate=cost,
    )(x, w1, b1_2d, w2)

    if lane_dense_out:
        return out.reshape(B, C)  # (1, B) -> (B, 1): free reshape (C == 1 only)
    return out


def reference(x, w1, b1, w2, k):
    h = jnp.maximum(x @ w1 + b1, 0.0) ** k
    return h @ w2


if __name__ == "__main__":
    # Module semantics: model(input_size=4, hidden_size1=32, num_classes=1, k=2)
    input_size = 4      # 4D QMC problem
    hidden_size1 = 32
    num_classes = 1
    k = 2
    batch = 128

    key = jax.random.PRNGKey(0)
    kx, kw1, kb1, kw2 = jax.random.split(key, 4)

    x = jax.random.normal(kx, (batch, input_size), dtype=jnp.float32)
    # Deterministic synthetic parameters (shapes match nn.Linear weights, transposed)
    bound1 = 1.0 / (input_size ** 0.5)
    w1 = jax.random.uniform(kw1, (input_size, hidden_size1),
                            minval=-bound1, maxval=bound1, dtype=jnp.float32)
    b1 = jax.random.uniform(kb1, (hidden_size1,),
                            minval=-bound1, maxval=bound1, dtype=jnp.float32)
    bound2 = 1.0 / (hidden_size1 ** 0.5)
    w2 = jax.random.uniform(kw2, (hidden_size1, num_classes),
                            minval=-bound2, maxval=bound2, dtype=jnp.float32)

    out = relu_k_mlp(x, w1, b1, w2, k=k)   # tile_b auto -> single grid step for B=128
    out = jax.block_until_ready(out)

    ref = reference(x, w1, b1, w2, k)
    assert out.shape == (batch, num_classes)
    assert jnp.allclose(out, ref, atol=1e-5, rtol=1e-5), "mismatch vs reference"

    print("KERNEL_OK")
</pallas_src>

<mosaic_0001>
module attributes {stable_mosaic.version = 11 : i64} {
  func.func @_relu_k_mlp_kernel(%arg0: i32, %arg1: memref<128x4xf32, #tpu.memory_space<vmem>>, %arg2: memref<4x32xf32, #tpu.memory_space<vmem>>, %arg3: memref<32x1xf32, #tpu.memory_space<vmem>>, %arg4: memref<32x1xf32, #tpu.memory_space<vmem>>, %arg5: memref<1x128xf32, #tpu.memory_space<vmem>>) attributes {dimension_semantics = [#tpu.dimension_semantics<parallel>], iteration_bounds = array<i64: 1>, scalar_prefetch = 0 : i64, scratch_operands = 0 : i64, tpu.core_type = #tpu.core_type<tc>, window_params = [{transform_indices = @transform_0, window_bounds = array<i64: 128, 4>}, {pipeline_mode = #tpu.pipeline_mode<synchronous>, transform_indices = @transform_1, window_bounds = array<i64: 4, 32>}, {pipeline_mode = #tpu.pipeline_mode<synchronous>, transform_indices = @transform_2, window_bounds = array<i64: 32, 1>}, {pipeline_mode = #tpu.pipeline_mode<synchronous>, transform_indices = @transform_3, window_bounds = array<i64: 32, 1>}, {transform_indices = @transform_4, window_bounds = array<i64: 1, 128>}]} {
    %c0 = arith.constant 0 : index
    %c0_0 = arith.constant 0 : index
    %0 = vector.load %arg1[%c0, %c0_0] : memref<128x4xf32, #tpu.memory_space<vmem>>, vector<128x4xf32>
    %c0_1 = arith.constant 0 : index
    %c0_2 = arith.constant 0 : index
    %1 = vector.load %arg2[%c0_1, %c0_2] : memref<4x32xf32, #tpu.memory_space<vmem>>, vector<4x32xf32>
    %c0_3 = arith.constant 0 : index
    %c0_4 = arith.constant 0 : index
    %2 = vector.load %arg3[%c0_3, %c0_4] : memref<32x1xf32, #tpu.memory_space<vmem>>, vector<32x1xf32>
    %c0_5 = arith.constant 0 : index
    %c0_6 = arith.constant 0 : index
    %3 = vector.load %arg4[%c0_5, %c0_6] : memref<32x1xf32, #tpu.memory_space<vmem>>, vector<32x1xf32>
    %cst = arith.constant dense<0.000000e+00> : vector<32x128xf32>
    %4 = tpu.matmul %1, %0, %cst {dimension_numbers = #tpu.dot_dimension_numbers<[0], [1], [1], [0], [0, 1, 1, 0], [], []>} : vector<4x32xf32>, vector<128x4xf32>, vector<32x128xf32> -> vector<32x128xf32>
    %5 = vector.broadcast %2 : vector<32x1xf32> to vector<32x128xf32>
    %6 = arith.addf %4, %5 : vector<32x128xf32>
    %cst_7 = arith.constant 0.000000e+00 : f32
    %7 = vector.broadcast %cst_7 : f32 to vector<32x128xf32>
    %8 = arith.maximumf %6, %7 : vector<32x128xf32>
    %9 = arith.mulf %8, %8 : vector<32x128xf32>
    %10 = vector.broadcast %3 : vector<32x1xf32> to vector<32x128xf32>
    %11 = arith.mulf %9, %10 : vector<32x128xf32>
    %cst_8 = arith.constant dense<0.000000e+00> : vector<128xf32>
    %12 = vector.multi_reduction <add>, %11, %cst_8 [0] : vector<32x128xf32> to vector<128xf32>
    %13 = vector.shape_cast %12 : vector<128xf32> to vector<1x128xf32>
    %c0_9 = arith.constant 0 : index
    %c0_10 = arith.constant 0 : index
    %14 = vector.load %arg5[%c0_9, %c0_10] : memref<1x128xf32, #tpu.memory_space<vmem>>, vector<1x128xf32>
    tpu.vector_store %arg5[%c0_9, %c0_10], %13 {strides = array<i32>} : memref<1x128xf32, #tpu.memory_space<vmem>>, vector<1x128xf32>,
    return
  }
  func.func @transform_0(%arg0: i32) -> (i32, i32) {
    %c0_i32 = arith.constant 0 : i32
    %c0_i32_0 = arith.constant 0 : i32
    return %arg0, %c0_i32 : i32, i32
  }
  func.func @transform_1(%arg0: i32) -> (i32, i32) {
    %c0_i32 = arith.constant 0 : i32
    %c0_i32_0 = arith.constant 0 : i32
    %c0_i32_1 = arith.constant 0 : i32
    return %c0_i32, %c0_i32_0 : i32, i32
  }
  func.func @transform_2(%arg0: i32) -> (i32, i32) {
    %c0_i32 = arith.constant 0 : i32
    %c0_i32_0 = arith.constant 0 : i32
    %c0_i32_1 = arith.constant 0 : i32
    return %c0_i32, %c0_i32_0 : i32, i32
  }
  func.func @transform_3(%arg0: i32) -> (i32, i32) {
    %c0_i32 = arith.constant 0 : i32
    %c0_i32_0 = arith.constant 0 : i32
    %c0_i32_1 = arith.constant 0 : i32
    return %c0_i32, %c0_i32_0 : i32, i32
  }
  func.func @transform_4(%arg0: i32) -> (i32, i32) {
    %c0_i32 = arith.constant 0 : i32
    %c0_i32_0 = arith.constant 0 : i32
    return %c0_i32, %arg0 : i32, i32
  }
}

</mosaic_0001>

<llo_original>
// kernel: tpu_custom_call.1
$region0: #{tpu_custom_call.1}
  #allocation0 [shape = 'u32[]', space=smem, size = 0x4, offset = 0x4, fixed_abs, tag = 'smem constant byte address 0x4 - core index']
  #allocation1 [shape = 'u32[144,128]{1,0:T(1,128)}', space=vmem, size = 0x12000, scoped, tag = 'internal scratch']
  %s0 = inlined_call_operand.vmem [shape: f32[128,4], index: 0, kind: input, shape index: {}]
  %s1 = inlined_call_operand.vmem [shape: f32[4,32], index: 1, kind: input, shape index: {}]
  %s2 = inlined_call_operand.vmem [shape: f32[32,1], index: 2, kind: input, shape index: {}]
  %s3 = inlined_call_operand.vmem [shape: f32[32,1], index: 3, kind: input, shape index: {}]
  %s4 = inlined_call_operand.hbm [shape: f32[1,128], index: 4, kind: output, shape index: {}]
  %s5 = sld [smem:[#allocation0]]
  $region26: #{tpu_custom_call.1} parent=0
    _
  %s7 = ssub.s32 1, %s5
  %s8 = scalar_select 0, %s7, %s5
  $region1: #{tpu_custom_call.1} parent=0
    #allocation2 [shape = 'u8[512]{0}', space=vmem, size = 0x400, scoped, tag = 'output window, operand 0, single buffered']
    #allocation3 [shape = 's32[1]{0}', space=sflag, size = 0x4, scoped, tag = 'scoped memory for tpu_custom_call.1']
    %9 = vsyncpa [#allocation3], 0
    // Predicated region
    $region2: #{tpu_custom_call.1} parent=1 // pred_check
      _
    $region3: #{tpu_custom_call.1} parent=1 // pred_check_branch
      %11 = sbr.rel (0) target = $region5
    $region4: #{tpu_custom_call.1} parent=1 // pred_region
      _
    $region5: #{tpu_custom_call.1} parent=1 // pred_fallthru
      _
    // Predicated region
    $region6: #{tpu_custom_call.1} parent=1 // pred_check
      _
    $region7: #{tpu_custom_call.1} parent=1 // pred_check_branch
      %13 = sbr.rel (0) target = $region9
    $region8: #{tpu_custom_call.1} parent=1 // pred_region
      _
    $region9: #{tpu_custom_call.1} parent=1 // pred_fallthru
      _
    // Predicated region
    $region10: #{tpu_custom_call.1} parent=1 // pred_check
      _
    $region11: #{tpu_custom_call.1} parent=1 // pred_check_branch
      %15 = sbr.rel (0) target = $region13
    $region12: #{tpu_custom_call.1} parent=1 // pred_region
      _
    $region13: #{tpu_custom_call.1} parent=1 // pred_fallthru
      _
    // Predicated region
    $region14: #{tpu_custom_call.1} parent=1 // pred_check
      _
    $region15: #{tpu_custom_call.1} parent=1 // pred_check_branch
      %17 = sbr.rel (0) target = $region17
    $region16: #{tpu_custom_call.1} parent=1 // pred_region
      _
    $region17: #{tpu_custom_call.1} parent=1 // pred_fallthru
      _
    %v18 = vld [vmem:[%s0] sm:$0xff]
    %v19 = vld [vmem:[%s0 + $0x8] sm:$0xff]
    %v20 = vld [vmem:[%s0 + $0x10] sm:$0xff]
    %v21 = vld [vmem:[%s0 + $0x18] sm:$0xff]
    %v22 = vld [vmem:[%s0 + $0x20] sm:$0xff]
    %v23 = vld [vmem:[%s0 + $0x28] sm:$0xff]
    %v24 = vld [vmem:[%s0 + $0x30] sm:$0xff]
    %v25 = vld [vmem:[%s0 + $0x38] sm:$0xff]
    %v26 = vld [vmem:[%s0 + $0x40] sm:$0xff]
    %v27 = vld [vmem:[%s0 + $0x48] sm:$0xff]
    %v28 = vld [vmem:[%s0 + $0x50] sm:$0xff]
    %v29 = vld [vmem:[%s0 + $0x58] sm:$0xff]
    %v30 = vld [vmem:[%s0 + $0x60] sm:$0xff]
    %v31 = vld [vmem:[%s0 + $0x68] sm:$0xff]
    %v32 = vld [vmem:[%s0 + $0x70] sm:$0xff]
    %v33 = vld [vmem:[%s0 + $0x78] sm:$0xff]
    %v34 = vld [vmem:[%s1] sm:$0xf]
    %v35 = vld [vmem:[%s2] sm:$0xff]
    %v36 = vld [vmem:[%s2 + $0x8] sm:$0xff]
    %v37 = vld [vmem:[%s2 + $0x10] sm:$0xff]
    %v38 = vld [vmem:[%s2 + $0x18] sm:$0xff]
    %v39 = vld [vmem:[%s3] sm:$0xff]
    %v40 = vld [vmem:[%s3 + $0x8] sm:$0xff]
    %v41 = vld [vmem:[%s3 + $0x10] sm:$0xff]
    %v42 = vld [vmem:[%s3 + $0x18] sm:$0xff]
    %44 = vset.pattern.permute.xlu0 0
    %45 = vperm.xlu0 %44, %v35
    %v46 = vpop.permute.xlu0 %45
    %49 = vset.pattern.permute.xlu0 0
    %50 = vperm.xlu0 %49, %v36
    %v51 = vpop.permute.xlu0 %50
    %54 = vset.pattern.permute.xlu0 0
    %55 = vperm.xlu0 %54, %v37
    %v56 = vpop.permute.xlu0 %55
    %59 = vset.pattern.permute.xlu0 0
    %60 = vperm.xlu0 %59, %v38
    %v61 = vpop.permute.xlu0 %60
    %63 = vxpose.xlu0.b32.start [1/16] %v34, 128
    %64 = vxpose.xlu0.b32.cont [2/16] 0.0, 128
    %65 = vxpose.xlu0.b32.cont [3/16] 0.0, 128
    %66 = vxpose.xlu0.b32.cont [4/16] 0.0, 128
    %67 = vxpose.xlu0.b32.cont [5/16] 0.0, 128
    %68 = vxpose.xlu0.b32.cont [6/16] 0.0, 128
    %69 = vxpose.xlu0.b32.cont [7/16] 0.0, 128
    %70 = vxpose.xlu0.b32.cont [8/16] 0.0, 128
    %71 = vxpose.xlu0.b32.cont [9/16] 0.0, 128
    %72 = vxpose.xlu0.b32.cont [10/16] 0.0, 128
    %73 = vxpose.xlu0.b32.cont [11/16] 0.0, 128
    %74 = vxpose.xlu0.b32.cont [12/16] 0.0, 128
    %75 = vxpose.xlu0.b32.cont [13/16] 0.0, 128
    %76 = vxpose.xlu0.b32.cont [14/16] 0.0, 128
    %77 = vxpose.xlu0.b32.cont [15/16] 0.0, 128
    %78 = vxpose.xlu0.b32.end [16/16] 0.0, 128
    %v79 = vpop.trf.xlu0
    %v80 = vpop.trf.xlu0
    %v81 = vpop.trf.xlu0
    %v82 = vpop.trf.xlu0
    %v83 = vpop.trf.xlu0
    %v84 = vpop.trf.xlu0
    %v85 = vpop.trf.xlu0
    %v86 = vpop.trf.xlu0
    %v87 = vpop.trf.xlu0
    %v88 = vpop.trf.xlu0
    %v89 = vpop.trf.xlu0
    %v90 = vpop.trf.xlu0
    %v91 = vpop.trf.xlu0
    %v92 = vpop.trf.xlu0
    %v93 = vpop.trf.xlu0
    %v94 = vpop.trf.xlu0
    %vm95 = vcmask 31744
    %v97 = vsel %vm95, %v79, 0
    %v100 = vsel %vm95, %v80, 0
    %v103 = vsel %vm95, %v81, 0
    %v106 = vsel %vm95, %v82, 0
    %v109 = vsel %vm95, %v18, 0
    %v112 = vsel %vm95, %v19, 0
    %v115 = vsel %vm95, %v20, 0
    %v118 = vsel %vm95, %v21, 0
    %v121 = vsel %vm95, %v22, 0
    %v124 = vsel %vm95, %v23, 0
    %v127 = vsel %vm95, %v24, 0
    %v130 = vsel %vm95, %v25, 0
    %v133 = vsel %vm95, %v26, 0
    %v136 = vsel %vm95, %v27, 0
    %v139 = vsel %vm95, %v28, 0
    %v142 = vsel %vm95, %v29, 0
    %v145 = vsel %vm95, %v30, 0
    %v148 = vsel %vm95, %v31, 0
    %v151 = vsel %vm95, %v32, 0
    %v154 = vsel %vm95, %v33, 0
    %156 = vmatprep.subr.mxu0 0.0
    %157 = vmatpush1.xpose.msra.mxu0 %v154
    %158 = vmatprep.subr.mxu0 0.0
    %159 = vmatpush1.xpose.msra.mxu0 %v151
    %160 = vmatprep.subr.mxu0 0.0
    %161 = vmatpush1.xpose.msra.mxu0 %v148
    %162 = vmatprep.subr.mxu0 0.0
    %163 = vmatpush1.xpose.msra.mxu0 %v145
    %164 = vmatprep.subr.mxu0 0.0
    %165 = vmatpush1.xpose.msra.mxu0 %v142
    %166 = vmatprep.subr.mxu0 0.0
    %167 = vmatpush1.xpose.msra.mxu0 %v139
    %168 = vmatprep.subr.mxu0 0.0
    %169 = vmatpush1.xpose.msra.mxu0 %v136
    %170 = vmatprep.subr.mxu0 0.0
    %171 = vmatpush1.xpose.msra.mxu0 %v133
    %172 = vmatprep.subr.mxu0 0.0
    %173 = vmatpush1.xpose.msra.mxu0 %v130
    %174 = vmatprep.subr.mxu0 0.0
    %175 = vmatpush1.xpose.msra.mxu0 %v127
    %176 = vmatprep.subr.mxu0 0.0
    %177 = vmatpush1.xpose.msra.mxu0 %v124
    %178 = vmatprep.subr.mxu0 0.0
    %179 = vmatpush1.xpose.msra.mxu0 %v121
    %180 = vmatprep.subr.mxu0 0.0
    %181 = vmatpush1.xpose.msra.mxu0 %v118
    %182 = vmatprep.subr.mxu0 0.0
    %183 = vmatpush1.xpose.msra.mxu0 %v115
    %184 = vmatprep.subr.mxu0 0.0
    %185 = vmatpush1.xpose.msra.mxu0 %v112
    %186 = vmatprep.subr.mxu0 0.0
    %187 = vmatpush1.xpose.msra.mxu0 %v109
    %188 = vmatprep.subr.mxu0 0.0
    %189 = vmatpush2.xpose.msra.mxu0 0.0
    %190 = vmatprep.subr.mxu0 0.0
    %191 = vmatpush2.xpose.msra.mxu0 0.0
    %192 = vmatprep.subr.mxu0 0.0
    %193 = vmatpush2.xpose.msra.mxu0 0.0
    %194 = vmatprep.subr.mxu0 0.0
    %195 = vmatpush2.xpose.msra.mxu0 0.0
    %196 = vmatprep.subr.mxu0 0.0
    %197 = vmatpush2.xpose.msra.mxu0 0.0
    %198 = vmatprep.subr.mxu0 0.0
    %199 = vmatpush2.xpose.msra.mxu0 0.0
    %200 = vmatprep.subr.mxu0 0.0
    %201 = vmatpush2.xpose.msra.mxu0 0.0
    %202 = vmatprep.subr.mxu0 0.0
    %203 = vmatpush2.xpose.msra.mxu0 0.0
    %204 = vmatprep.subr.mxu0 0.0
    %205 = vmatpush2.xpose.msra.mxu0 0.0
    %206 = vmatprep.subr.mxu0 0.0
    %207 = vmatpush2.xpose.msra.mxu0 0.0
    %208 = vmatprep.subr.mxu0 0.0
    %209 = vmatpush2.xpose.msra.mxu0 0.0
    %210 = vmatprep.subr.mxu0 0.0
    %211 = vmatpush2.xpose.msra.mxu0 0.0
    %212 = vmatprep.subr.mxu0 0.0
    %213 = vmatpush2.xpose.msra.mxu0 0.0
    %214 = vmatprep.subr.mxu0 0.0
    %215 = vmatpush2.xpose.msra.mxu0 0.0
    %216 = vmatprep.subr.mxu0 0.0
    %217 = vmatpush2.xpose.msra.mxu0 0.0
    %218 = vmatprep.subr.mxu0 0.0
    %219 = vmatpush2.xpose.msra.mxu0 0.0
    %220 = vmatprep.mubr.f32.mxu0 0.0
    %221 = vmatmul.mubr.f32.gmra.mxu0 %v97
    %v222 = vpop.f32.mrf.mxu0
    %v223 = vadd.f32 %v46, %v222
    %v224 = vpop.f32.mrf.mxu0
    %225 = vmatprep.mubr.f32.mxu0 0.0
    %226 = vmatmul.mubr.f32.gmra.mxu0 %v100
    %v227 = vpop.f32.mrf.mxu0
    %v228 = vadd.f32 %v51, %v227
    %v229 = vpop.f32.mrf.mxu0
    %230 = vmatprep.mubr.f32.mxu0 0.0
    %231 = vmatmul.mubr.f32.gmra.mxu0 %v103
    %v232 = vpop.f32.mrf.mxu0
    %v233 = vadd.f32 %v56, %v232
    %v234 = vpop.f32.mrf.mxu0
    %235 = vmatprep.mubr.f32.mxu0 0.0
    %236 = vmatmul.mubr.f32.gmra.mxu0 %v106
    %v237 = vpop.f32.mrf.mxu0
    %v238 = vadd.f32 %v61, %v237
    %v239 = vpop.f32.mrf.mxu0
    %240 = vdwg.mxu0
    %v241 = vmax.f32 %v223, 0.0
    %v242 = vmax.f32 %v228, 0.0
    %v243 = vmax.f32 %v233, 0.0
    %v244 = vmax.f32 %v238, 0.0
    %v245 = vmul.f32 %v241, %v241
    %v246 = vmul.f32 %v242, %v242
    %v247 = vmul.f32 %v243, %v243
    %v248 = vmul.f32 %v244, %v244
    %250 = vset.pattern.permute.xlu0 0
    %251 = vperm.xlu0 %250, %v39
    %v252 = vpop.permute.xlu0 %251
    %255 = vset.pattern.permute.xlu0 0
    %256 = vperm.xlu0 %255, %v40
    %v257 = vpop.permute.xlu0 %256
    %260 = vset.pattern.permute.xlu0 0
    %261 = vperm.xlu0 %260, %v41
    %v262 = vpop.permute.xlu0 %261
    %265 = vset.pattern.permute.xlu0 0
    %266 = vperm.xlu0 %265, %v42
    %v267 = vpop.permute.xlu0 %266
    %v269 = vmul.f32 %v245, %v252
    %v270 = vmul.f32 %v246, %v257
    %v271 = vmul.f32 %v247, %v262
    %v272 = vmul.f32 %v248, %v267
    %v273 = vadd.f32 %v269, %v270
    %v274 = vadd.f32 %v273, %v271
    %v275 = vadd.f32 %v274, %v272
    %v276 = vrot.slane %v275, 4
    %v277 = vadd.f32 %v275, %v276
    %v278 = vrot.slane %v277, 2
    %v279 = vadd.f32 %v277, %v278
    %v280 = vrot.slane %v279, 1
    %v281 = vadd.f32 %v279, %v280
    %282 = vst [vmem:[#allocation2] sm:$0x1] %v281
    // Predicated region
    $region18: #{tpu_custom_call.1} parent=1 // pred_check
      _
    $region19: #{tpu_custom_call.1} parent=1 // pred_check_branch
      %284 = sbr.rel (0) target = $region21
    $region20: #{tpu_custom_call.1} parent=1 // pred_region
      %s286 = ssub.s32 16, 16
      %287 = vsyncadd [#allocation3], %s286
      %s289 = sshll.u32 [#allocation2], 4
      %s290 = int_to_ptr.vmem [resolvable:$true] %s289
      %292 = dma.vmem_to_hbm [thread:$0]  %s290, 16, %s4, [#allocation3]
    $region21: #{tpu_custom_call.1} parent=1 // pred_fallthru
      _
    // Predicated region
    $region22: #{tpu_custom_call.1} parent=1 // pred_check
      _
    $region23: #{tpu_custom_call.1} parent=1 // pred_check_branch
      %294 = sbr.rel (0) target = $region25
    $region24: #{tpu_custom_call.1} parent=1 // pred_region
      %295 = dma.done [#allocation3], 16
    $region25: #{tpu_custom_call.1} parent=1 // pred_fallthru
      _
    %296 = vsyncpa [#allocation3], 1

</llo_original>
